<compile_context>
chip_gen: v6e
topology: v6e:2x2x1
jax: 0.10.0
libtpu: 0.0.40
codegen_flags: <defaults>
</compile_context>

<pallas_src>
import functools

import jax
import jax.numpy as jnp
from jax.experimental import pallas as pl
from jax.experimental.pallas import tpu as pltpu

LANE = 128
SUBLANE = 8
MAX_BATCH_TILE = 2048     # per-step VMEM at this tile: ~2.3 MB, fine on v5e/v6e/v7x
SINGLE_STEP_MAX = 256     # batches up to this size run as one grid step


def _round_up(x, m):
    return ((x + m - 1) // m) * m


def _critic_kernel(x_ref, w1_ref, wh_ref, b_ref, o_ref):
    """Fused 4-layer MLP: 3x (dot + bias + relu) then dot + bias + tanh."""
    w_dtype = wh_ref.dtype  # bf16 weights -> bf16 MXU inputs, f32 accumulation

    # Layer 1 (single aligned dot; concat was done in the wrapper).
    h = jnp.dot(x_ref[...], w1_ref[...], preferred_element_type=jnp.float32)
    h = jnp.maximum(h + b_ref[0:1, :], 0.0).astype(w_dtype)

    # Layer 2
    h = jnp.dot(h, wh_ref[0], preferred_element_type=jnp.float32)
    h = jnp.maximum(h + b_ref[1:2, :], 0.0).astype(w_dtype)

    # Layer 3
    h = jnp.dot(h, wh_ref[1], preferred_element_type=jnp.float32)
    h = jnp.maximum(h + b_ref[2:3, :], 0.0).astype(w_dtype)

    # Layer 4 + tanh (padded lanes stay exactly 0 -> tanh(0)=0).
    y = jnp.dot(h, wh_ref[2], preferred_element_type=jnp.float32) + b_ref[3:4, :]
    o_ref[...] = jnp.tanh(y).astype(o_ref.dtype)


def init_params(key, input_size, hidden_size, output_size):
    """Deterministic torch-style init. Weights stored as [in, out]."""
    ks = jax.random.split(key, 8)

    def lin(kw, kb, fan_in, fan_out):
        bound = 1.0 / jnp.sqrt(fan_in)
        w = jax.random.uniform(kw, (fan_in, fan_out), jnp.float32, -bound, bound)
        b = jax.random.uniform(kb, (1, fan_out), jnp.float32, -bound, bound)
        return w, b

    w1, b1 = lin(ks[0], ks[1], input_size, hidden_size)
    w2, b2 = lin(ks[2], ks[3], hidden_size, hidden_size)
    w3, b3 = lin(ks[4], ks[5], hidden_size, hidden_size)
    w4, b4 = lin(ks[6], ks[7], hidden_size, output_size)
    return (w1, b1, w2, b2, w3, b3, w4, b4)


def pack_params(params, dtype=jnp.float32):
    """Re-layout params into lane-dense kernel arrays (done once, outside kernel).

    Returns (w1, wh, bias):
      w1   [K, P]     W1 with rows zero-padded to K = round_up(in_dim, 8) and
                      cols zero-padded to P (cast to `dtype`)
      wh   [3, P, P]  W2, W3, W4 zero-padded and stacked (cast to `dtype`)
      bias [4, P]     b1..b4 zero-padded and packed (always f32)
    with P = round_up(max(hidden, out_dim), 128).  Zero padding keeps padded
    lanes exactly zero through the whole relu/tanh chain.
    """
    w1, b1, w2, b2, w3, b3, w4, b4 = params
    in_dim, hidden = w1.shape
    out_dim = w4.shape[1]
    K = _round_up(in_dim, SUBLANE)
    P = _round_up(max(hidden, out_dim), LANE)

    w1p = jnp.zeros((K, P), dtype).at[:in_dim, :hidden].set(w1.astype(dtype))

    def pad_w(w):
        return jnp.zeros((P, P), dtype).at[: w.shape[0], : w.shape[1]].set(
            w.astype(dtype))

    wh = jnp.stack([pad_w(w2), pad_w(w3), pad_w(w4)])

    bias = jnp.zeros((4, P), jnp.float32)
    bias = bias.at[0, :hidden].set(b1.reshape(-1))
    bias = bias.at[1, :hidden].set(b2.reshape(-1))
    bias = bias.at[2, :hidden].set(b3.reshape(-1))
    bias = bias.at[3, :out_dim].set(b4.reshape(-1))
    return w1p, wh, bias


@functools.partial(jax.jit, static_argnames=("out_dim",))
def critic_forward(s, a, packed, *, out_dim):
    """Fused Critic MLP. s: [B, state_dim], a: [B, action_dim] -> [B, out_dim]."""
    w1, wh, bias = packed
    B = s.shape[0]
    K, P = w1.shape

    # Layer-1 fusion: concat + K-pad in the wrapper (tiny fused XLA op) so the
    # kernel does one sublane-aligned dot and one activation DMA per step.
    x = jnp.concatenate([s, a], axis=1)
    in_dim = x.shape[1]
    if in_dim != K:
        x = jnp.pad(x, ((0, 0), (0, K - in_dim)))
    x = x.astype(w1.dtype)

    if B <= SINGLE_STEP_MAX:
        TB, B_pad = B, B                    # single grid step, whole batch
    else:
        # >=2 grid steps so the "parallel" batch axis shards across both v7x
        # TensorCores; capped tile keeps per-step VMEM small. Tail rows are
        # zero-padded and sliced off below.
        TB = min(_round_up(pl.cdiv(B, 2), SUBLANE), MAX_BATCH_TILE)
        B_pad = _round_up(B, TB)
        if B_pad != B:
            x = jnp.pad(x, ((0, B_pad - B), (0, 0)))

    # Weights/biases are fetched once (constant index_map); drop the dead
    # second pipeline buffer to free VMEM headroom.
    resident = dict(pipeline_mode=pl.Buffered(1))

    out = pl.pallas_call(
        _critic_kernel,
        out_shape=jax.ShapeDtypeStruct((B_pad, P), jnp.float32),
        grid_spec=pltpu.PrefetchScalarGridSpec(
            num_scalar_prefetch=0,
            grid=(B_pad // TB,),
            in_specs=[
                pl.BlockSpec((TB, K), lambda i: (i, 0)),
                pl.BlockSpec((K, P), lambda i: (0, 0), **resident),
                pl.BlockSpec((3, P, P), lambda i: (0, 0, 0), **resident),
                pl.BlockSpec((4, P), lambda i: (0, 0), **resident),
            ],
            out_specs=pl.BlockSpec((TB, P), lambda i: (i, 0)),
        ),
        compiler_params=pltpu.CompilerParams(
            dimension_semantics=("parallel",)),
    )(x, w1, wh, bias)

    # Strip batch padding and padded output lanes outside the kernel
    # (output stays lane-dense [TB, 128] inside -> unmasked stores).
    return out[:B, :out_dim]


def critic_apply(s, a, packed, out_dim):
    """Non-jitted entry: bucket B to the next power of two so varying DDPG
    batch sizes (e.g. final partial batches) don't trigger recompiles."""
    B = s.shape[0]
    Bb = max(SUBLANE, 1 << (B - 1).bit_length()) if B > 1 else SUBLANE
    if Bb != B:
        s = jnp.pad(s, ((0, Bb - B), (0, 0)))
        a = jnp.pad(a, ((0, Bb - B), (0, 0)))
    return critic_forward(s, a, packed, out_dim=out_dim)[:B]


def critic_ref(s, a, params):
    """Pure-JAX reference (mirrors the PyTorch module)."""
    w1, b1, w2, b2, w3, b3, w4, b4 = params
    x = jnp.concatenate([s, a], axis=1)
    x = jax.nn.relu(x @ w1 + b1)
    x = jax.nn.relu(x @ w2 + b2)
    x = jax.nn.relu(x @ w3 + b3)
    return jnp.tanh(x @ w4 + b4)


if __name__ == "__main__":
    key = jax.random.PRNGKey(0)
    k_s, k_a, k_p, k_s2, k_a2 = jax.random.split(key, 5)

    batch = 2
    state_dim = 12
    action_dim = 4
    input_size = state_dim + action_dim   # 16
    hidden_size = 32
    output_size = 4

    params = init_params(k_p, input_size, hidden_size, output_size)
    packed = pack_params(params)                       # f32 (default) path

    # Small-batch check (bucketed to 8 rows, single grid step).
    s = jax.random.normal(k_s, (batch, state_dim), jnp.float32)
    a = jax.random.normal(k_a, (batch, action_dim), jnp.float32)
    out = jax.block_until_ready(critic_apply(s, a, packed, output_size))
    ref = critic_ref(s, a, params)
    assert out.shape == (batch, output_size)
    assert jnp.allclose(out, ref, atol=1e-5, rtol=1e-5), "small-batch mismatch"

    # Larger-batch check (bucketed to 512 -> 2 grid steps, resident weights).
    big = 500
    s2 = jax.random.normal(k_s2, (big, state_dim), jnp.float32)
    a2 = jax.random.normal(k_a2, (big, action_dim), jnp.float32)
    out2 = jax.block_until_ready(critic_apply(s2, a2, packed, output_size))
    ref2 = critic_ref(s2, a2, params)
    assert out2.shape == (big, output_size)
    assert jnp.allclose(out2, ref2, atol=1e-5, rtol=1e-5), "batched mismatch"

    # Optional bf16 MXU path (f32 accumulation): looser tolerance by design.
    packed_bf16 = pack_params(params, dtype=jnp.bfloat16)
    out_bf = jax.block_until_ready(critic_apply(s2, a2, packed_bf16, output_size))
    assert out_bf.shape == (big, output_size)
    assert jnp.allclose(out_bf, ref2, atol=5e-2, rtol=5e-2), "bf16 mismatch"

    print("KERNEL_OK")
</pallas_src>

<mosaic_0001>
module attributes {stable_mosaic.version = 11 : i64} {
  func.func @_critic_kernel(%arg0: i32, %arg1: memref<8x16xf32, #tpu.memory_space<vmem>>, %arg2: memref<16x128xf32, #tpu.memory_space<vmem>>, %arg3: memref<3x128x128xf32, #tpu.memory_space<vmem>>, %arg4: memref<4x128xf32, #tpu.memory_space<vmem>>, %arg5: memref<8x128xf32, #tpu.memory_space<vmem>>) attributes {dimension_semantics = [#tpu.dimension_semantics<parallel>], iteration_bounds = array<i64: 1>, scalar_prefetch = 0 : i64, scratch_operands = 0 : i64, tpu.core_type = #tpu.core_type<tc>, window_params = [{transform_indices = @transform_0, window_bounds = array<i64: 8, 16>}, {pipeline_mode = #tpu.pipeline_mode<synchronous>, transform_indices = @transform_1, window_bounds = array<i64: 16, 128>}, {pipeline_mode = #tpu.pipeline_mode<synchronous>, transform_indices = @transform_2, window_bounds = array<i64: 3, 128, 128>}, {pipeline_mode = #tpu.pipeline_mode<synchronous>, transform_indices = @transform_3, window_bounds = array<i64: 4, 128>}, {transform_indices = @transform_4, window_bounds = array<i64: 8, 128>}]} {
    %c0 = arith.constant 0 : index
    %c0_0 = arith.constant 0 : index
    %0 = vector.load %arg1[%c0, %c0_0] : memref<8x16xf32, #tpu.memory_space<vmem>>, vector<8x16xf32>
    %c0_1 = arith.constant 0 : index
    %c0_2 = arith.constant 0 : index
    %1 = vector.load %arg2[%c0_1, %c0_2] : memref<16x128xf32, #tpu.memory_space<vmem>>, vector<16x128xf32>
    %cst = arith.constant dense<0.000000e+00> : vector<8x128xf32>
    %2 = tpu.matmul %0, %1, %cst {dimension_numbers = #tpu.dot_dimension_numbers<[1], [0], [0], [1], [0, 0, 1, 1], [], []>} : vector<8x16xf32>, vector<16x128xf32>, vector<8x128xf32> -> vector<8x128xf32>
    %c0_3 = arith.constant 0 : index
    %c0_4 = arith.constant 0 : index
    %3 = vector.load %arg4[%c0_3, %c0_4] : memref<4x128xf32, #tpu.memory_space<vmem>>, vector<1x128xf32>
    %4 = vector.broadcast %3 : vector<1x128xf32> to vector<8x128xf32>
    %5 = arith.addf %2, %4 : vector<8x128xf32>
    %cst_5 = arith.constant 0.000000e+00 : f32
    %6 = vector.broadcast %cst_5 : f32 to vector<8x128xf32>
    %7 = arith.maximumf %5, %6 : vector<8x128xf32>
    %c0_6 = arith.constant 0 : index
    %c0_7 = arith.constant 0 : index
    %c0_8 = arith.constant 0 : index
    %8 = vector.load %arg3[%c0_6, %c0_7, %c0_8] : memref<3x128x128xf32, #tpu.memory_space<vmem>>, vector<1x128x128xf32>
    %9 = vector.shape_cast %8 : vector<1x128x128xf32> to vector<128x128xf32>
    %cst_9 = arith.constant dense<0.000000e+00> : vector<8x128xf32>
    %10 = tpu.matmul %7, %9, %cst_9 {dimension_numbers = #tpu.dot_dimension_numbers<[1], [0], [0], [1], [0, 0, 1, 1], [], []>} : vector<8x128xf32>, vector<128x128xf32>, vector<8x128xf32> -> vector<8x128xf32>
    %c1 = arith.constant 1 : index
    %c0_10 = arith.constant 0 : index
    %11 = vector.load %arg4[%c1, %c0_10] : memref<4x128xf32, #tpu.memory_space<vmem>>, vector<1x128xf32>
    %12 = vector.broadcast %11 : vector<1x128xf32> to vector<8x128xf32>
    %13 = arith.addf %10, %12 : vector<8x128xf32>
    %cst_11 = arith.constant 0.000000e+00 : f32
    %14 = vector.broadcast %cst_11 : f32 to vector<8x128xf32>
    %15 = arith.maximumf %13, %14 : vector<8x128xf32>
    %c1_12 = arith.constant 1 : index
    %c0_13 = arith.constant 0 : index
    %c0_14 = arith.constant 0 : index
    %16 = vector.load %arg3[%c1_12, %c0_13, %c0_14] : memref<3x128x128xf32, #tpu.memory_space<vmem>>, vector<1x128x128xf32>
    %17 = vector.shape_cast %16 : vector<1x128x128xf32> to vector<128x128xf32>
    %cst_15 = arith.constant dense<0.000000e+00> : vector<8x128xf32>
    %18 = tpu.matmul %15, %17, %cst_15 {dimension_numbers = #tpu.dot_dimension_numbers<[1], [0], [0], [1], [0, 0, 1, 1], [], []>} : vector<8x128xf32>, vector<128x128xf32>, vector<8x128xf32> -> vector<8x128xf32>
    %c2 = arith.constant 2 : index
    %c0_16 = arith.constant 0 : index
    %19 = vector.load %arg4[%c2, %c0_16] : memref<4x128xf32, #tpu.memory_space<vmem>>, vector<1x128xf32>
    %20 = vector.broadcast %19 : vector<1x128xf32> to vector<8x128xf32>
    %21 = arith.addf %18, %20 : vector<8x128xf32>
    %cst_17 = arith.constant 0.000000e+00 : f32
    %22 = vector.broadcast %cst_17 : f32 to vector<8x128xf32>
    %23 = arith.maximumf %21, %22 : vector<8x128xf32>
    %c2_18 = arith.constant 2 : index
    %c0_19 = arith.constant 0 : index
    %c0_20 = arith.constant 0 : index
    %24 = vector.load %arg3[%c2_18, %c0_19, %c0_20] : memref<3x128x128xf32, #tpu.memory_space<vmem>>, vector<1x128x128xf32>
    %25 = vector.shape_cast %24 : vector<1x128x128xf32> to vector<128x128xf32>
    %cst_21 = arith.constant dense<0.000000e+00> : vector<8x128xf32>
    %26 = tpu.matmul %23, %25, %cst_21 {dimension_numbers = #tpu.dot_dimension_numbers<[1], [0], [0], [1], [0, 0, 1, 1], [], []>} : vector<8x128xf32>, vector<128x128xf32>, vector<8x128xf32> -> vector<8x128xf32>
    %c3 = arith.constant 3 : index
    %c0_22 = arith.constant 0 : index
    %27 = vector.load %arg4[%c3, %c0_22] : memref<4x128xf32, #tpu.memory_space<vmem>>, vector<1x128xf32>
    %28 = vector.broadcast %27 : vector<1x128xf32> to vector<8x128xf32>
    %29 = arith.addf %26, %28 : vector<8x128xf32>
    %30 = math.tanh %29 : vector<8x128xf32>
    %c0_23 = arith.constant 0 : index
    %c0_24 = arith.constant 0 : index
    %31 = vector.load %arg5[%c0_23, %c0_24] : memref<8x128xf32, #tpu.memory_space<vmem>>, vector<8x128xf32>
    tpu.vector_store %arg5[%c0_23, %c0_24], %30 {strides = array<i32>} : memref<8x128xf32, #tpu.memory_space<vmem>>, vector<8x128xf32>,
    return
  }
  func.func @transform_0(%arg0: i32) -> (i32, i32) {
    %c0_i32 = arith.constant 0 : i32
    %c0_i32_0 = arith.constant 0 : i32
    return %arg0, %c0_i32 : i32, i32
  }
  func.func @transform_1(%arg0: i32) -> (i32, i32) {
    %c0_i32 = arith.constant 0 : i32
    %c0_i32_0 = arith.constant 0 : i32
    %c0_i32_1 = arith.constant 0 : i32
    return %c0_i32, %c0_i32_0 : i32, i32
  }
  func.func @transform_2(%arg0: i32) -> (i32, i32, i32) {
    %c0_i32 = arith.constant 0 : i32
    %c0_i32_0 = arith.constant 0 : i32
    %c0_i32_1 = arith.constant 0 : i32
    %c0_i32_2 = arith.constant 0 : i32
    return %c0_i32, %c0_i32_0, %c0_i32_1 : i32, i32, i32
  }
  func.func @transform_3(%arg0: i32) -> (i32, i32) {
    %c0_i32 = arith.constant 0 : i32
    %c0_i32_0 = arith.constant 0 : i32
    %c0_i32_1 = arith.constant 0 : i32
    return %c0_i32, %c0_i32_0 : i32, i32
  }
  func.func @transform_4(%arg0: i32) -> (i32, i32) {
    %c0_i32 = arith.constant 0 : i32
    %c0_i32_0 = arith.constant 0 : i32
    return %arg0, %c0_i32 : i32, i32
  }
}

</mosaic_0001>

<llo_original>
// kernel: critic_forward.1
$region0: #{critic_forward.1}
  #allocation0 [shape = 'u32[]', space=smem, size = 0x4, offset = 0x4, fixed_abs, tag = 'smem constant byte address 0x4 - core index']
  #allocation1 [shape = 'u32[144,128]{1,0:T(1,128)}', space=vmem, size = 0x12000, scoped, tag = 'internal scratch']
  %s0 = inlined_call_operand.vmem [shape: f32[8,16], index: 0, kind: input, shape index: {}]
  %s1 = inlined_call_operand.vmem [shape: f32[16,128], index: 1, kind: input, shape index: {}]
  %s2 = inlined_call_operand.hbm [shape: f32[3,128,128], index: 2, kind: input, shape index: {}]
  %s3 = inlined_call_operand.vmem [shape: f32[4,128], index: 3, kind: input, shape index: {}]
  %s4 = inlined_call_operand.vmem [shape: f32[8,128], index: 4, kind: output, shape index: {}]
  %s5 = sld [smem:[#allocation0]]
  $region30: #{critic_forward.1} parent=0
    _
  %s7 = ssub.s32 1, %s5
  %s8 = scalar_select 0, %s7, %s5
  $region1: #{critic_forward.1} parent=0
    #allocation2 [shape = 'u8[196608]{0}', space=vmem, size = 0x30000, scoped, tag = 'input window, operand 2, single buffered']
    #allocation3 [shape = 's32[1]{0}', space=sflag, size = 0x4, scoped, tag = 'scoped memory for critic_forward.1']
    %9 = vsyncpa [#allocation3], 0
    // Predicated region
    $region2: #{critic_forward.1} parent=1 // pred_check
      _
    $region3: #{critic_forward.1} parent=1 // pred_check_branch
      %11 = sbr.rel (0) target = $region5
    $region4: #{critic_forward.1} parent=1 // pred_region
      _
    $region5: #{critic_forward.1} parent=1 // pred_fallthru
      _
    // Predicated region
    $region6: #{critic_forward.1} parent=1 // pred_check
      _
    $region7: #{critic_forward.1} parent=1 // pred_check_branch
      %13 = sbr.rel (0) target = $region9
    $region8: #{critic_forward.1} parent=1 // pred_region
      _
    $region9: #{critic_forward.1} parent=1 // pred_fallthru
      _
    // Predicated region
    $region10: #{critic_forward.1} parent=1 // pred_check
      _
    $region11: #{critic_forward.1} parent=1 // pred_check_branch
      %15 = sbr.rel (0) target = $region13
    $region12: #{critic_forward.1} parent=1 // pred_region
      %s17 = ssub.s32 6144, 6144
      %18 = vsyncadd [#allocation3], %s17
      %s19 = sshll.u32 [#allocation2], 4
      %s20 = int_to_ptr.vmem [resolvable:$true] %s19
      %25 = dma.hbm_to_vmem [thread:$0]  %s2, 6144, %s20, [#allocation3], 128, 128, 8
    $region13: #{critic_forward.1} parent=1 // pred_fallthru
      _
    // Predicated region
    $region14: #{critic_forward.1} parent=1 // pred_check
      _
    $region15: #{critic_forward.1} parent=1 // pred_check_branch
      %27 = sbr.rel (0) target = $region17
    $region16: #{critic_forward.1} parent=1 // pred_region
      _
    $region17: #{critic_forward.1} parent=1 // pred_fallthru
      _
    // Predicated region
    $region18: #{critic_forward.1} parent=1 // pred_check
      _
    $region19: #{critic_forward.1} parent=1 // pred_check_branch
      %29 = sbr.rel (0) target = $region21
    $region20: #{critic_forward.1} parent=1 // pred_region
      %30 = dma.done [#allocation3], 6144
    $region21: #{critic_forward.1} parent=1 // pred_fallthru
      _
    %v31 = vld [vmem:[%s0] sm:$0xff]
    %v32 = vld [vmem:[%s1] sm:$0xff]
    %v33 = vld [vmem:[%s1 + $0x8] sm:$0xff]
    %v34 = vld [vmem:[%s3] sm:$0x1]
    %v35 = vlaneseq
    %v36 = vshrl.u32 %v35, 7
    %v37 = vsub.s32 0, %v36
    %v38 = vrot.slane %v34, %v37
    %vm39 = vcmask 130048
    %v41 = vsel %vm39, %v31, 0
    %43 = vmatprep.subr.mxu0 0.0
    %44 = vmatpush1.msra.mxu0 0.0
    %45 = vmatprep.subr.mxu0 0.0
    %46 = vmatpush1.msra.mxu0 0.0
    %47 = vmatprep.subr.mxu0 0.0
    %48 = vmatpush1.msra.mxu0 0.0
    %49 = vmatprep.subr.mxu0 0.0
    %50 = vmatpush1.msra.mxu0 0.0
    %51 = vmatprep.subr.mxu0 0.0
    %52 = vmatpush1.msra.mxu0 0.0
    %53 = vmatprep.subr.mxu0 0.0
    %54 = vmatpush1.msra.mxu0 0.0
    %55 = vmatprep.subr.mxu0 0.0
    %56 = vmatpush1.msra.mxu0 0.0
    %57 = vmatprep.subr.mxu0 0.0
    %58 = vmatpush1.msra.mxu0 0.0
    %59 = vmatprep.subr.mxu0 0.0
    %60 = vmatpush1.msra.mxu0 0.0
    %61 = vmatprep.subr.mxu0 0.0
    %62 = vmatpush1.msra.mxu0 0.0
    %63 = vmatprep.subr.mxu0 0.0
    %64 = vmatpush1.msra.mxu0 0.0
    %65 = vmatprep.subr.mxu0 0.0
    %66 = vmatpush1.msra.mxu0 0.0
    %67 = vmatprep.subr.mxu0 0.0
    %68 = vmatpush1.msra.mxu0 0.0
    %69 = vmatprep.subr.mxu0 0.0
    %70 = vmatpush1.msra.mxu0 0.0
    %71 = vmatprep.subr.mxu0 0.0
    %72 = vmatpush1.msra.mxu0 %v33
    %73 = vmatprep.subr.mxu0 0.0
    %74 = vmatpush1.msra.mxu0 %v32
    %75 = vmatprep.subr.mxu0 0.0
    %76 = vmatpush2.msra.mxu0 0.0
    %77 = vmatprep.subr.mxu0 0.0
    %78 = vmatpush2.msra.mxu0 0.0
    %79 = vmatprep.subr.mxu0 0.0
    %80 = vmatpush2.msra.mxu0 0.0
    %81 = vmatprep.subr.mxu0 0.0
    %82 = vmatpush2.msra.mxu0 0.0
    %83 = vmatprep.subr.mxu0 0.0
    %84 = vmatpush2.msra.mxu0 0.0
    %85 = vmatprep.subr.mxu0 0.0
    %86 = vmatpush2.msra.mxu0 0.0
    %87 = vmatprep.subr.mxu0 0.0
    %88 = vmatpush2.msra.mxu0 0.0
    %89 = vmatprep.subr.mxu0 0.0
    %90 = vmatpush2.msra.mxu0 0.0
    %91 = vmatprep.subr.mxu0 0.0
    %92 = vmatpush2.msra.mxu0 0.0
    %93 = vmatprep.subr.mxu0 0.0
    %94 = vmatpush2.msra.mxu0 0.0
    %95 = vmatprep.subr.mxu0 0.0
    %96 = vmatpush2.msra.mxu0 0.0
    %97 = vmatprep.subr.mxu0 0.0
    %98 = vmatpush2.msra.mxu0 0.0
    %99 = vmatprep.subr.mxu0 0.0
    %100 = vmatpush2.msra.mxu0 0.0
    %101 = vmatprep.subr.mxu0 0.0
    %102 = vmatpush2.msra.mxu0 0.0
    %103 = vmatprep.subr.mxu0 0.0
    %104 = vmatpush2.msra.mxu0 0.0
    %105 = vmatprep.subr.mxu0 0.0
    %106 = vmatpush2.msra.mxu0 0.0
    %107 = vmatprep.mubr.f32.mxu0 0.0
    %108 = vmatmul.mubr.f32.gmra.mxu0 %v41
    %v109 = vpop.f32.mrf.mxu0
    %v110 = vadd.f32 %v38, %v109
    %v111 = vpop.f32.mrf.mxu0
    %112 = vdwg.mxu0
    %v113 = vmax.f32 %v110, 0.0
    %v114 = vld [vmem:[#allocation2] sm:$0xff]
    %v115 = vld [vmem:[#allocation2 + $0x8] sm:$0xff]
    %v116 = vld [vmem:[#allocation2 + $0x10] sm:$0xff]
    %v117 = vld [vmem:[#allocation2 + $0x18] sm:$0xff]
    %v118 = vld [vmem:[#allocation2 + $0x20] sm:$0xff]
    %v119 = vld [vmem:[#allocation2 + $0x28] sm:$0xff]
    %v120 = vld [vmem:[#allocation2 + $0x30] sm:$0xff]
    %v121 = vld [vmem:[#allocation2 + $0x38] sm:$0xff]
    %v122 = vld [vmem:[#allocation2 + $0x40] sm:$0xff]
    %v123 = vld [vmem:[#allocation2 + $0x48] sm:$0xff]
    %v124 = vld [vmem:[#allocation2 + $0x50] sm:$0xff]
    %v125 = vld [vmem:[#allocation2 + $0x58] sm:$0xff]
    %v126 = vld [vmem:[#allocation2 + $0x60] sm:$0xff]
    %v127 = vld [vmem:[#allocation2 + $0x68] sm:$0xff]
    %v128 = vld [vmem:[#allocation2 + $0x70] sm:$0xff]
    %v129 = vld [vmem:[#allocation2 + $0x78] sm:$0xff]
    %v130 = vld [vmem:[%s3 + $0x1] sm:$0x1]
    %v131 = vlaneseq
    %v132 = vshrl.u32 %v131, 7
    %v133 = vsub.s32 0, %v132
    %v134 = vrot.slane %v130, %v133
    %135 = vmatprep.subr.mxu0 0.0
    %136 = vmatpush1.msra.mxu0 %v129
    %137 = vmatprep.subr.mxu0 0.0
    %138 = vmatpush1.msra.mxu0 %v128
    %139 = vmatprep.subr.mxu0 0.0
    %140 = vmatpush1.msra.mxu0 %v127
    %141 = vmatprep.subr.mxu0 0.0
    %142 = vmatpush1.msra.mxu0 %v126
    %143 = vmatprep.subr.mxu0 0.0
    %144 = vmatpush1.msra.mxu0 %v125
    %145 = vmatprep.subr.mxu0 0.0
    %146 = vmatpush1.msra.mxu0 %v124
    %147 = vmatprep.subr.mxu0 0.0
    %148 = vmatpush1.msra.mxu0 %v123
    %149 = vmatprep.subr.mxu0 0.0
    %150 = vmatpush1.msra.mxu0 %v122
    %151 = vmatprep.subr.mxu0 0.0
    %152 = vmatpush1.msra.mxu0 %v121
    %153 = vmatprep.subr.mxu0 0.0
    %154 = vmatpush1.msra.mxu0 %v120
    %155 = vmatprep.subr.mxu0 0.0
    %156 = vmatpush1.msra.mxu0 %v119
    %157 = vmatprep.subr.mxu0 0.0
    %158 = vmatpush1.msra.mxu0 %v118
    %159 = vmatprep.subr.mxu0 0.0
    %160 = vmatpush1.msra.mxu0 %v117
    %161 = vmatprep.subr.mxu0 0.0
    %162 = vmatpush1.msra.mxu0 %v116
    %163 = vmatprep.subr.mxu0 0.0
    %164 = vmatpush1.msra.mxu0 %v115
    %165 = vmatprep.subr.mxu0 0.0
    %166 = vmatpush1.msra.mxu0 %v114
    %167 = vmatprep.subr.mxu0 0.0
    %168 = vmatpush2.msra.mxu0 0.0
    %169 = vmatprep.subr.mxu0 0.0
    %170 = vmatpush2.msra.mxu0 0.0
    %171 = vmatprep.subr.mxu0 0.0
    %172 = vmatpush2.msra.mxu0 0.0
    %173 = vmatprep.subr.mxu0 0.0
    %174 = vmatpush2.msra.mxu0 0.0
    %175 = vmatprep.subr.mxu0 0.0
    %176 = vmatpush2.msra.mxu0 0.0
    %177 = vmatprep.subr.mxu0 0.0
    %178 = vmatpush2.msra.mxu0 0.0
    %179 = vmatprep.subr.mxu0 0.0
    %180 = vmatpush2.msra.mxu0 0.0
    %181 = vmatprep.subr.mxu0 0.0
    %182 = vmatpush2.msra.mxu0 0.0
    %183 = vmatprep.subr.mxu0 0.0
    %184 = vmatpush2.msra.mxu0 0.0
    %185 = vmatprep.subr.mxu0 0.0
    %186 = vmatpush2.msra.mxu0 0.0
    %187 = vmatprep.subr.mxu0 0.0
    %188 = vmatpush2.msra.mxu0 0.0
    %189 = vmatprep.subr.mxu0 0.0
    %190 = vmatpush2.msra.mxu0 0.0
    %191 = vmatprep.subr.mxu0 0.0
    %192 = vmatpush2.msra.mxu0 0.0
    %193 = vmatprep.subr.mxu0 0.0
    %194 = vmatpush2.msra.mxu0 0.0
    %195 = vmatprep.subr.mxu0 0.0
    %196 = vmatpush2.msra.mxu0 0.0
    %197 = vmatprep.subr.mxu0 0.0
    %198 = vmatpush2.msra.mxu0 0.0
    %199 = vmatprep.mubr.f32.mxu0 0.0
    %200 = vmatmul.mubr.f32.gmra.mxu0 %v113
    %v201 = vpop.f32.mrf.mxu0
    %v202 = vadd.f32 %v134, %v201
    %v203 = vpop.f32.mrf.mxu0
    %204 = vdwg.mxu0
    %v205 = vmax.f32 %v202, 0.0
    %s206 = scalar_lea.vmem [#allocation2], 128
    %v207 = vld [vmem:[%s206] sm:$0xff]
    %v208 = vld [vmem:[%s206 + $0x8] sm:$0xff]
    %v209 = vld [vmem:[%s206 + $0x10] sm:$0xff]
    %v210 = vld [vmem:[%s206 + $0x18] sm:$0xff]
    %v211 = vld [vmem:[%s206 + $0x20] sm:$0xff]
    %v212 = vld [vmem:[%s206 + $0x28] sm:$0xff]
    %v213 = vld [vmem:[%s206 + $0x30] sm:$0xff]
    %v214 = vld [vmem:[%s206 + $0x38] sm:$0xff]
    %v215 = vld [vmem:[%s206 + $0x40] sm:$0xff]
    %v216 = vld [vmem:[%s206 + $0x48] sm:$0xff]
    %v217 = vld [vmem:[%s206 + $0x50] sm:$0xff]
    %v218 = vld [vmem:[%s206 + $0x58] sm:$0xff]
    %v219 = vld [vmem:[%s206 + $0x60] sm:$0xff]
    %v220 = vld [vmem:[%s206 + $0x68] sm:$0xff]
    %v221 = vld [vmem:[%s206 + $0x70] sm:$0xff]
    %v222 = vld [vmem:[%s206 + $0x78] sm:$0xff]
    %v223 = vld [vmem:[%s3 + $0x2] sm:$0x1]
    %v224 = vlaneseq
    %v225 = vshrl.u32 %v224, 7
    %v226 = vsub.s32 0, %v225
    %v227 = vrot.slane %v223, %v226
    %228 = vmatprep.subr.mxu0 0.0
    %229 = vmatpush1.msra.mxu0 %v222
    %230 = vmatprep.subr.mxu0 0.0
    %231 = vmatpush1.msra.mxu0 %v221
    %232 = vmatprep.subr.mxu0 0.0
    %233 = vmatpush1.msra.mxu0 %v220
    %234 = vmatprep.subr.mxu0 0.0
    %235 = vmatpush1.msra.mxu0 %v219
    %236 = vmatprep.subr.mxu0 0.0
    %237 = vmatpush1.msra.mxu0 %v218
    %238 = vmatprep.subr.mxu0 0.0
    %239 = vmatpush1.msra.mxu0 %v217
    %240 = vmatprep.subr.mxu0 0.0
    %241 = vmatpush1.msra.mxu0 %v216
    %242 = vmatprep.subr.mxu0 0.0
    %243 = vmatpush1.msra.mxu0 %v215
    %244 = vmatprep.subr.mxu0 0.0
    %245 = vmatpush1.msra.mxu0 %v214
    %246 = vmatprep.subr.mxu0 0.0
    %247 = vmatpush1.msra.mxu0 %v213
    %248 = vmatprep.subr.mxu0 0.0
    %249 = vmatpush1.msra.mxu0 %v212
    %250 = vmatprep.subr.mxu0 0.0
    %251 = vmatpush1.msra.mxu0 %v211
    %252 = vmatprep.subr.mxu0 0.0
    %253 = vmatpush1.msra.mxu0 %v210
    %254 = vmatprep.subr.mxu0 0.0
    %255 = vmatpush1.msra.mxu0 %v209
    %256 = vmatprep.subr.mxu0 0.0
    %257 = vmatpush1.msra.mxu0 %v208
    %258 = vmatprep.subr.mxu0 0.0
    %259 = vmatpush1.msra.mxu0 %v207
    %260 = vmatprep.subr.mxu0 0.0
    %261 = vmatpush2.msra.mxu0 0.0
    %262 = vmatprep.subr.mxu0 0.0
    %263 = vmatpush2.msra.mxu0 0.0
    %264 = vmatprep.subr.mxu0 0.0
    %265 = vmatpush2.msra.mxu0 0.0
    %266 = vmatprep.subr.mxu0 0.0
    %267 = vmatpush2.msra.mxu0 0.0
    %268 = vmatprep.subr.mxu0 0.0
    %269 = vmatpush2.msra.mxu0 0.0
    %270 = vmatprep.subr.mxu0 0.0
    %271 = vmatpush2.msra.mxu0 0.0
    %272 = vmatprep.subr.mxu0 0.0
    %273 = vmatpush2.msra.mxu0 0.0
    %274 = vmatprep.subr.mxu0 0.0
    %275 = vmatpush2.msra.mxu0 0.0
    %276 = vmatprep.subr.mxu0 0.0
    %277 = vmatpush2.msra.mxu0 0.0
    %278 = vmatprep.subr.mxu0 0.0
    %279 = vmatpush2.msra.mxu0 0.0
    %280 = vmatprep.subr.mxu0 0.0
    %281 = vmatpush2.msra.mxu0 0.0
    %282 = vmatprep.subr.mxu0 0.0
    %283 = vmatpush2.msra.mxu0 0.0
    %284 = vmatprep.subr.mxu0 0.0
    %285 = vmatpush2.msra.mxu0 0.0
    %286 = vmatprep.subr.mxu0 0.0
    %287 = vmatpush2.msra.mxu0 0.0
    %288 = vmatprep.subr.mxu0 0.0
    %289 = vmatpush2.msra.mxu0 0.0
    %290 = vmatprep.subr.mxu0 0.0
    %291 = vmatpush2.msra.mxu0 0.0
    %292 = vmatprep.mubr.f32.mxu0 0.0
    %293 = vmatmul.mubr.f32.gmra.mxu0 %v205
    %v294 = vpop.f32.mrf.mxu0
    %v295 = vadd.f32 %v227, %v294
    %v296 = vpop.f32.mrf.mxu0
    %297 = vdwg.mxu0
    %v298 = vmax.f32 %v295, 0.0
    %s299 = scalar_lea.vmem [#allocation2], 256
    %v300 = vld [vmem:[%s299] sm:$0xff]
    %v301 = vld [vmem:[%s299 + $0x8] sm:$0xff]
    %v302 = vld [vmem:[%s299 + $0x10] sm:$0xff]
    %v303 = vld [vmem:[%s299 + $0x18] sm:$0xff]
    %v304 = vld [vmem:[%s299 + $0x20] sm:$0xff]
    %v305 = vld [vmem:[%s299 + $0x28] sm:$0xff]
    %v306 = vld [vmem:[%s299 + $0x30] sm:$0xff]
    %v307 = vld [vmem:[%s299 + $0x38] sm:$0xff]
    %v308 = vld [vmem:[%s299 + $0x40] sm:$0xff]
    %v309 = vld [vmem:[%s299 + $0x48] sm:$0xff]
    %v310 = vld [vmem:[%s299 + $0x50] sm:$0xff]
    %v311 = vld [vmem:[%s299 + $0x58] sm:$0xff]
    %v312 = vld [vmem:[%s299 + $0x60] sm:$0xff]
    %v313 = vld [vmem:[%s299 + $0x68] sm:$0xff]
    %v314 = vld [vmem:[%s299 + $0x70] sm:$0xff]
    %v315 = vld [vmem:[%s299 + $0x78] sm:$0xff]
    %v316 = vld [vmem:[%s3 + $0x3] sm:$0x1]
    %v317 = vlaneseq
    %v318 = vshrl.u32 %v317, 7
    %v319 = vsub.s32 0, %v318
    %v320 = vrot.slane %v316, %v319
    %321 = vmatprep.subr.mxu0 0.0
    %322 = vmatpush1.msra.mxu0 %v315
    %323 = vmatprep.subr.mxu0 0.0
    %324 = vmatpush1.msra.mxu0 %v314
    %325 = vmatprep.subr.mxu0 0.0
    %326 = vmatpush1.msra.mxu0 %v313
    %327 = vmatprep.subr.mxu0 0.0
    %328 = vmatpush1.msra.mxu0 %v312
    %329 = vmatprep.subr.mxu0 0.0
    %330 = vmatpush1.msra.mxu0 %v311
    %331 = vmatprep.subr.mxu0 0.0
    %332 = vmatpush1.msra.mxu0 %v310
    %333 = vmatprep.subr.mxu0 0.0
    %334 = vmatpush1.msra.mxu0 %v309
    %335 = vmatprep.subr.mxu0 0.0
    %336 = vmatpush1.msra.mxu0 %v308
    %337 = vmatprep.subr.mxu0 0.0
    %338 = vmatpush1.msra.mxu0 %v307
    %339 = vmatprep.subr.mxu0 0.0
    %340 = vmatpush1.msra.mxu0 %v306
    %341 = vmatprep.subr.mxu0 0.0
    %342 = vmatpush1.msra.mxu0 %v305
    %343 = vmatprep.subr.mxu0 0.0
    %344 = vmatpush1.msra.mxu0 %v304
    %345 = vmatprep.subr.mxu0 0.0
    %346 = vmatpush1.msra.mxu0 %v303
    %347 = vmatprep.subr.mxu0 0.0
    %348 = vmatpush1.msra.mxu0 %v302
    %349 = vmatprep.subr.mxu0 0.0
    %350 = vmatpush1.msra.mxu0 %v301
    %351 = vmatprep.subr.mxu0 0.0
    %352 = vmatpush1.msra.mxu0 %v300
    %353 = vmatprep.subr.mxu0 0.0
    %354 = vmatpush2.msra.mxu0 0.0
    %355 = vmatprep.subr.mxu0 0.0
    %356 = vmatpush2.msra.mxu0 0.0
    %357 = vmatprep.subr.mxu0 0.0
    %358 = vmatpush2.msra.mxu0 0.0
    %359 = vmatprep.subr.mxu0 0.0
    %360 = vmatpush2.msra.mxu0 0.0
    %361 = vmatprep.subr.mxu0 0.0
    %362 = vmatpush2.msra.mxu0 0.0
    %363 = vmatprep.subr.mxu0 0.0
    %364 = vmatpush2.msra.mxu0 0.0
    %365 = vmatprep.subr.mxu0 0.0
    %366 = vmatpush2.msra.mxu0 0.0
    %367 = vmatprep.subr.mxu0 0.0
    %368 = vmatpush2.msra.mxu0 0.0
    %369 = vmatprep.subr.mxu0 0.0
    %370 = vmatpush2.msra.mxu0 0.0
    %371 = vmatprep.subr.mxu0 0.0
    %372 = vmatpush2.msra.mxu0 0.0
    %373 = vmatprep.subr.mxu0 0.0
    %374 = vmatpush2.msra.mxu0 0.0
    %375 = vmatprep.subr.mxu0 0.0
    %376 = vmatpush2.msra.mxu0 0.0
    %377 = vmatprep.subr.mxu0 0.0
    %378 = vmatpush2.msra.mxu0 0.0
    %379 = vmatprep.subr.mxu0 0.0
    %380 = vmatpush2.msra.mxu0 0.0
    %381 = vmatprep.subr.mxu0 0.0
    %382 = vmatpush2.msra.mxu0 0.0
    %383 = vmatprep.subr.mxu0 0.0
    %384 = vmatpush2.msra.mxu0 0.0
    %385 = vmatprep.mubr.f32.mxu0 0.0
    %386 = vmatmul.mubr.f32.gmra.mxu0 %v298
    %v387 = vpop.f32.mrf.mxu0
    %v388 = vadd.f32 %v320, %v387
    %v389 = vpop.f32.mrf.mxu0
    %390 = vdwg.mxu0
    %v391 = vtanh.pop %v388
    %392 = vst [vmem:[%s4] sm:$0xff] %v391
    // Predicated region
    $region22: #{critic_forward.1} parent=1 // pred_check
      _
    $region23: #{critic_forward.1} parent=1 // pred_check_branch
      %394 = sbr.rel (0) target = $region25
    $region24: #{critic_forward.1} parent=1 // pred_region
      _
    $region25: #{critic_forward.1} parent=1 // pred_fallthru
      _
    // Predicated region
    $region26: #{critic_forward.1} parent=1 // pred_check
      _
    $region27: #{critic_forward.1} parent=1 // pred_check_branch
      %396 = sbr.rel (0) target = $region29
    $region28: #{critic_forward.1} parent=1 // pred_region
      _
    $region29: #{critic_forward.1} parent=1 // pred_fallthru
      _
    %397 = vsyncpa [#allocation3], 1

</llo_original>
